<compile_context>
chip_gen: v7x
topology: tpu7x:2x2x1
jax: 0.10.0
libtpu: 0.0.40
codegen_flags: <defaults>
</compile_context>

<pallas_src>
import jax
import jax.numpy as jnp
from jax.experimental import pallas as pl
from jax.experimental.pallas import tpu as pltpu

_LANE = 128
_TARGET_BLOCK_BYTES = 2 * 1024 * 1024  # ~2 MiB per block -> 8 MiB with 2x(in+out) buffers


def _reciprocal_kernel(x_ref, o_ref):
    # Purely memory-bound elementwise op; exact reciprocal matches
    # torch.reciprocal and costs nothing extra vs approx (HBM is the roofline).
    o_ref[...] = 1.0 / x_ref[...]


def _sublane_align(dtype) -> int:
    itemsize = jnp.dtype(dtype).itemsize
    return {4: 8, 2: 16, 1: 32}.get(itemsize, 8)


def _choose_lane_width(n: int) -> int:
    # Prefer a wide, 128-multiple last dim for unmasked vst and low per-tile overhead.
    for lane in (8192, 4096, 2048, 1024, 512, 256, 128):
        if n % lane == 0:
            return lane
    return 0  # n is not a multiple of 128 -> ragged tail handled outside the kernel


def _reciprocal_2d(x2d):
    rows, lane = x2d.shape
    dtype = x2d.dtype
    itemsize = jnp.dtype(dtype).itemsize
    sub_align = _sublane_align(dtype)

    target_rows = max(1, _TARGET_BLOCK_BYTES // (lane * itemsize))
    if target_rows >= rows:
        tr = rows  # full extent along sublane dim (always legal)
    else:
        tr = max(sub_align, (target_rows // sub_align) * sub_align)
        tr = min(tr, rows)

    grid = (pl.cdiv(rows, tr),)
    return pl.pallas_call(
        _reciprocal_kernel,
        out_shape=jax.ShapeDtypeStruct((rows, lane), dtype),
        grid=grid,
        in_specs=[pl.BlockSpec((tr, lane), lambda i: (i, 0))],
        out_specs=pl.BlockSpec((tr, lane), lambda i: (i, 0)),
        compiler_params=pltpu.CompilerParams(
            dimension_semantics=("parallel",),
        ),
    )(x2d)


def reciprocal(x):
    """Elementwise reciprocal, matching torch.reciprocal(x)."""
    orig_shape = x.shape

    # torch.reciprocal promotes integer/bool inputs to float.
    if not jnp.issubdtype(x.dtype, jnp.floating):
        x = x.astype(jnp.float32)
    dtype = x.dtype

    n = x.size
    if n == 0:
        return jnp.reshape(x, orig_shape)

    lane = _choose_lane_width(n)
    if lane:
        # Whole array maps cleanly onto a lane-dense (rows, lane) slab.
        out2d = _reciprocal_2d(x.reshape(n // lane, lane))
        return out2d.reshape(orig_shape)

    # Ragged case: kernel on the 128-divisible prefix, tiny tail in plain jnp
    # (no full-array pad/slice round trip over HBM).
    x_flat = x.reshape(-1)
    n_main = (n // _LANE) * _LANE
    parts = []
    if n_main:
        main2d = _reciprocal_2d(x_flat[:n_main].reshape(n_main // _LANE, _LANE))
        parts.append(main2d.reshape(-1))
    tail = x_flat[n_main:]
    parts.append(1.0 / tail)
    return jnp.concatenate(parts).reshape(orig_shape).astype(dtype)


if __name__ == "__main__":
    key = jax.random.PRNGKey(0)
    # Small NCHW input consistent with an elementwise unary module.
    x = jax.random.normal(key, (2, 4, 16, 16), dtype=jnp.float32)
    # Keep values away from zero for a stable numerical check.
    x = jnp.where(jnp.abs(x) < 1e-3, 1e-3, x)

    y = reciprocal(x)
    jax.block_until_ready(y)

    ref = 1.0 / x
    assert y.shape == x.shape and y.dtype == x.dtype
    assert jnp.allclose(y, ref, rtol=1e-6, atol=1e-6)
    print("KERNEL_OK")
</pallas_src>

<mosaic_0001>
module attributes {stable_mosaic.version = 11 : i64} {
  func.func @_reciprocal_kernel(%arg0: i32, %arg1: memref<1x2048xf32, #tpu.memory_space<vmem>>, %arg2: memref<1x2048xf32, #tpu.memory_space<vmem>>) attributes {dimension_semantics = [#tpu.dimension_semantics<parallel>], iteration_bounds = array<i64: 1>, scalar_prefetch = 0 : i64, scratch_operands = 0 : i64, tpu.core_type = #tpu.core_type<tc>, window_params = [{transform_indices = @transform_0, window_bounds = array<i64: 1, 2048>}, {transform_indices = @transform_1, window_bounds = array<i64: 1, 2048>}]} {
    %c0 = arith.constant 0 : index
    %c0_0 = arith.constant 0 : index
    %0 = vector.load %arg1[%c0, %c0_0] : memref<1x2048xf32, #tpu.memory_space<vmem>>, vector<1x2048xf32>
    %cst = arith.constant 1.000000e+00 : f32
    %1 = vector.broadcast %cst : f32 to vector<1x2048xf32>
    %2 = arith.divf %1, %0 : vector<1x2048xf32>
    %c0_1 = arith.constant 0 : index
    %c0_2 = arith.constant 0 : index
    %3 = vector.load %arg2[%c0_1, %c0_2] : memref<1x2048xf32, #tpu.memory_space<vmem>>, vector<1x2048xf32>
    tpu.vector_store %arg2[%c0_1, %c0_2], %2 {strides = array<i32>} : memref<1x2048xf32, #tpu.memory_space<vmem>>, vector<1x2048xf32>,
    return
  }
  func.func @transform_0(%arg0: i32) -> (i32, i32) {
    %c0_i32 = arith.constant 0 : i32
    %c0_i32_0 = arith.constant 0 : i32
    return %arg0, %c0_i32 : i32, i32
  }
  func.func @transform_1(%arg0: i32) -> (i32, i32) {
    %c0_i32 = arith.constant 0 : i32
    %c0_i32_0 = arith.constant 0 : i32
    return %arg0, %c0_i32 : i32, i32
  }
}

</mosaic_0001>

<llo_original>
// kernel: tpu_custom_call.1
$region0: #{tpu_custom_call.1}
  #allocation0 [shape = 'u32[]', space=smem, size = 0x4, offset = 0x4, fixed_abs, tag = 'smem constant byte address 0x4 - core index']
  #allocation1 [shape = 'u32[144,128]{1,0:T(1,128)}', space=vmem, size = 0x12000, scoped, tag = 'internal scratch']
  %s0 = inlined_call_operand.hbm [shape: f32[1,2048], index: 0, kind: input, shape index: {}]
  %s1 = inlined_call_operand.hbm [shape: f32[1,2048], index: 1, kind: output, shape index: {}]
  %s2 = sld [smem:[#allocation0]]
  $region18: #{tpu_custom_call.1} parent=0
    _
  %s4 = ssub.s32 1, %s2
  %s5 = scalar_select 0, %s4, %s2
  $region1: #{tpu_custom_call.1} parent=0
    #allocation2 [shape = 'u8[8192]{0}', space=vmem, size = 0x2000, scoped, tag = 'input window, operand 0, single buffered']
    #allocation3 [shape = 's32[1]{0}', space=sflag, size = 0x4, scoped, tag = 'scoped memory for tpu_custom_call.1']
    #allocation4 [shape = 's32[1]{0}', space=sflag, size = 0x4, scoped, tag = 'scoped memory for tpu_custom_call.1']
    #allocation5 [shape = 'u8[8192]{0}', space=vmem, size = 0x2000, scoped, tag = 'output window, operand 0, single buffered']
    %6 = vsyncpa [#allocation3], 0
    %7 = vsyncpa [#allocation4], 0
    // Predicated region
    $region2: #{tpu_custom_call.1} parent=1 // pred_check
      _
    $region3: #{tpu_custom_call.1} parent=1 // pred_check_branch
      %9 = sbr.rel (0) target = $region5
    $region4: #{tpu_custom_call.1} parent=1 // pred_region
      %s11 = ssub.s32 256, 256
      %12 = vsyncadd [#allocation3], %s11
      %s14 = sshll.u32 [#allocation2], 4
      %s15 = int_to_ptr.vmem [resolvable:$true] %s14
      %17 = dma.hbm_to_vmem [thread:$0]  %s0, 256, %s15, [#allocation3]
    $region5: #{tpu_custom_call.1} parent=1 // pred_fallthru
      _
    // Predicated region
    $region6: #{tpu_custom_call.1} parent=1 // pred_check
      _
    $region7: #{tpu_custom_call.1} parent=1 // pred_check_branch
      %19 = sbr.rel (0) target = $region9
    $region8: #{tpu_custom_call.1} parent=1 // pred_region
      %20 = dma.done [#allocation3], 256
    $region9: #{tpu_custom_call.1} parent=1 // pred_fallthru
      _
    %v21 = vld [vmem:[#allocation2] sm:$0xff]
    %v22 = vld [vmem:[#allocation2 + $0x8] sm:$0xff]
    %v23 = vrcp.pop %v21
    %v24 = vmul.f32 1.0, %v23
    %v25 = vrcp.pop %v22
    %v26 = vmul.f32 1.0, %v25
    %27 = vst [vmem:[#allocation5] sm:$0xff] %v24
    %28 = vst [vmem:[#allocation5 + $0x8] sm:$0xff] %v26
    // Predicated region
    $region10: #{tpu_custom_call.1} parent=1 // pred_check
      _
    $region11: #{tpu_custom_call.1} parent=1 // pred_check_branch
      %30 = sbr.rel (0) target = $region13
    $region12: #{tpu_custom_call.1} parent=1 // pred_region
      %s32 = ssub.s32 256, 256
      %33 = vsyncadd [#allocation4], %s32
      %s35 = sshll.u32 [#allocation5], 4
      %s36 = int_to_ptr.vmem [resolvable:$true] %s35
      %38 = dma.vmem_to_hbm [thread:$0]  %s36, 256, %s1, [#allocation4]
    $region13: #{tpu_custom_call.1} parent=1 // pred_fallthru
      _
    // Predicated region
    $region14: #{tpu_custom_call.1} parent=1 // pred_check
      _
    $region15: #{tpu_custom_call.1} parent=1 // pred_check_branch
      %40 = sbr.rel (0) target = $region17
    $region16: #{tpu_custom_call.1} parent=1 // pred_region
      %41 = dma.done [#allocation4], 256
    $region17: #{tpu_custom_call.1} parent=1 // pred_fallthru
      _
    %42 = vsyncpa [#allocation3], 1
    %43 = vsyncpa [#allocation4], 1

</llo_original>
